<compile_context>
chip_gen: v5e
topology: v5e:2x2
jax: 0.10.0
libtpu: 0.0.40
codegen_flags: <defaults>
</compile_context>

<pallas_src>
import jax
import jax.numpy as jnp
from jax.experimental import pallas as pl
from jax.experimental.pallas import tpu as pltpu


def token_merge_kernel(x_ref, w_ref, b_ref, o1_ref, o2_ref):
    # x_ref: (tm, C) ; w_ref: (C, 2C) ; b_ref: (1, 2C)
    # o1_ref / o2_ref: (tm, C) each  (fused torch.split)
    z = jnp.dot(x_ref[...], w_ref[...], preferred_element_type=jnp.float32)
    z = jnp.maximum(z + b_ref[...], 0.0)
    C = o1_ref.shape[-1]
    o1_ref[...] = z[:, :C].astype(o1_ref.dtype)
    o2_ref[...] = z[:, C:].astype(o2_ref.dtype)


def token_merge_forward(x, w, b, *, tm=512, cast_to_bf16=False):
    """TokenMerge forward.

    x: (N, B, C) ; w: (C, 2C) (transpose of PyTorch's nn.Linear weight) ; b: (2C,).
    Returns (z1, z2), each (N, B, C), matching torch.split(ReLU(Linear(x)), C, -1).
    """
    N, B, C = x.shape
    M = N * B
    out_dtype = x.dtype

    x2d = x.reshape(M, C)
    b2d = b.reshape(1, 2 * C).astype(jnp.float32)
    w2d = w

    if cast_to_bf16:
        # Halves x/w HBM traffic and uses the MXU bf16 fast path; f32 accumulation.
        x2d = x2d.astype(jnp.bfloat16)
        w2d = w2d.astype(jnp.bfloat16)

    # Effective row tile: multiple of 8 sublanes, no larger than (padded) M.
    m_pad8 = ((M + 7) // 8) * 8
    tm_eff = min(tm, m_pad8)
    m_final = ((M + tm_eff - 1) // tm_eff) * tm_eff
    if m_final != M:
        x2d = jnp.pad(x2d, ((0, m_final - M), (0, 0)))

    grid = (m_final // tm_eff,)

    in_itemsize = jnp.dtype(x2d.dtype).itemsize
    out_itemsize = jnp.dtype(out_dtype).itemsize
    cost = pl.CostEstimate(
        flops=2 * m_final * C * (2 * C),
        transcendentals=0,
        bytes_accessed=(
            m_final * C * in_itemsize            # x
            + C * (2 * C) * in_itemsize          # w
            + 2 * C * 4                          # bias
            + 2 * m_final * C * out_itemsize     # two split outputs
        ),
    )

    o1, o2 = pl.pallas_call(
        token_merge_kernel,
        out_shape=(
            jax.ShapeDtypeStruct((m_final, C), out_dtype),
            jax.ShapeDtypeStruct((m_final, C), out_dtype),
        ),
        grid_spec=pltpu.PrefetchScalarGridSpec(
            num_scalar_prefetch=0,
            grid=grid,
            in_specs=[
                pl.BlockSpec((tm_eff, C), lambda i: (i, 0)),      # x tile
                pl.BlockSpec((C, 2 * C), lambda i: (0, 0)),       # w: VMEM-resident
                pl.BlockSpec((1, 2 * C), lambda i: (0, 0)),       # bias: VMEM-resident
            ],
            out_specs=[
                pl.BlockSpec((tm_eff, C), lambda i: (i, 0)),
                pl.BlockSpec((tm_eff, C), lambda i: (i, 0)),
            ],
        ),
        compiler_params=pltpu.CompilerParams(
            dimension_semantics=("parallel",),   # independent row blocks -> megacore
        ),
        cost_estimate=cost,
    )(x2d, w2d, b2d)

    if m_final != M:
        o1 = o1[:M]
        o2 = o2[:M]
    return o1.reshape(N, B, C), o2.reshape(N, B, C)


def reference_forward(x, w, b):
    z = jnp.maximum(jnp.einsum("nbc,cd->nbd", x, w) + b, 0.0)
    C = x.shape[-1]
    return z[..., :C], z[..., C:]


if __name__ == "__main__":
    # Small shapes consistent with the module: N tokens, B batch, C channels.
    N, B, C = 8, 2, 32
    key = jax.random.PRNGKey(0)
    kx, kw, kb = jax.random.split(key, 3)

    x = jax.random.normal(kx, (N, B, C), dtype=jnp.float32)
    # Deterministic parameter init (synthetic; mimics nn.Linear(C, 2C) shapes,
    # weight stored transposed as (C, 2C)).
    w = jax.random.normal(kw, (C, 2 * C), dtype=jnp.float32) * (1.0 / jnp.sqrt(C))
    b = jax.random.normal(kb, (2 * C,), dtype=jnp.float32) * 0.01

    z1, z2 = token_merge_forward(x, w, b, tm=512, cast_to_bf16=False)
    jax.block_until_ready((z1, z2))

    r1, r2 = reference_forward(x, w, b)
    assert z1.shape == (N, B, C) and z2.shape == (N, B, C)
    assert jnp.allclose(z1, r1, atol=1e-5, rtol=1e-5)
    assert jnp.allclose(z2, r2, atol=1e-5, rtol=1e-5)

    print("KERNEL_OK")
</pallas_src>

<mosaic_0001>
module attributes {stable_mosaic.version = 11 : i64} {
  func.func @token_merge_kernel(%arg0: i32, %arg1: memref<16x32xf32, #tpu.memory_space<vmem>>, %arg2: memref<32x64xf32, #tpu.memory_space<vmem>>, %arg3: memref<1x64xf32, #tpu.memory_space<vmem>>, %arg4: memref<16x32xf32, #tpu.memory_space<vmem>>, %arg5: memref<16x32xf32, #tpu.memory_space<vmem>>) attributes {dimension_semantics = [#tpu.dimension_semantics<parallel>], iteration_bounds = array<i64: 1>, scalar_prefetch = 0 : i64, scratch_operands = 0 : i64, tpu.core_type = #tpu.core_type<tc>, window_params = [{transform_indices = @transform_0, window_bounds = array<i64: 16, 32>}, {pipeline_mode = #tpu.pipeline_mode<synchronous>, transform_indices = @transform_1, window_bounds = array<i64: 32, 64>}, {pipeline_mode = #tpu.pipeline_mode<synchronous>, transform_indices = @transform_2, window_bounds = array<i64: 1, 64>}, {transform_indices = @transform_3, window_bounds = array<i64: 16, 32>}, {transform_indices = @transform_4, window_bounds = array<i64: 16, 32>}]} {
    %c0 = arith.constant 0 : index
    %c0_0 = arith.constant 0 : index
    %0 = vector.load %arg1[%c0, %c0_0] : memref<16x32xf32, #tpu.memory_space<vmem>>, vector<16x32xf32>
    %c0_1 = arith.constant 0 : index
    %c0_2 = arith.constant 0 : index
    %1 = vector.load %arg2[%c0_1, %c0_2] : memref<32x64xf32, #tpu.memory_space<vmem>>, vector<32x64xf32>
    %cst = arith.constant dense<0.000000e+00> : vector<16x64xf32>
    %2 = tpu.matmul %0, %1, %cst {dimension_numbers = #tpu.dot_dimension_numbers<[1], [0], [0], [1], [0, 0, 1, 1], [], []>} : vector<16x32xf32>, vector<32x64xf32>, vector<16x64xf32> -> vector<16x64xf32>
    %c0_3 = arith.constant 0 : index
    %c0_4 = arith.constant 0 : index
    %3 = vector.load %arg3[%c0_3, %c0_4] : memref<1x64xf32, #tpu.memory_space<vmem>>, vector<1x64xf32>
    %4 = vector.broadcast %3 : vector<1x64xf32> to vector<16x64xf32>
    %5 = arith.addf %2, %4 : vector<16x64xf32>
    %cst_5 = arith.constant 0.000000e+00 : f32
    %6 = vector.broadcast %cst_5 : f32 to vector<16x64xf32>
    %7 = arith.maximumf %5, %6 : vector<16x64xf32>
    %8 = vector.extract_strided_slice %7 {offsets = [0, 0], sizes = [16, 32], strides = [1, 1]} : vector<16x64xf32> to vector<16x32xf32>
    %c0_6 = arith.constant 0 : index
    %c0_7 = arith.constant 0 : index
    %9 = vector.load %arg4[%c0_6, %c0_7] : memref<16x32xf32, #tpu.memory_space<vmem>>, vector<16x32xf32>
    tpu.vector_store %arg4[%c0_6, %c0_7], %8 {strides = array<i32>} : memref<16x32xf32, #tpu.memory_space<vmem>>, vector<16x32xf32>,
    %10 = vector.extract_strided_slice %7 {offsets = [0, 32], sizes = [16, 32], strides = [1, 1]} : vector<16x64xf32> to vector<16x32xf32>
    %c0_8 = arith.constant 0 : index
    %c0_9 = arith.constant 0 : index
    %11 = vector.load %arg5[%c0_8, %c0_9] : memref<16x32xf32, #tpu.memory_space<vmem>>, vector<16x32xf32>
    tpu.vector_store %arg5[%c0_8, %c0_9], %10 {strides = array<i32>} : memref<16x32xf32, #tpu.memory_space<vmem>>, vector<16x32xf32>,
    return
  }
  func.func @transform_0(%arg0: i32) -> (i32, i32) {
    %c0_i32 = arith.constant 0 : i32
    %c0_i32_0 = arith.constant 0 : i32
    return %arg0, %c0_i32 : i32, i32
  }
  func.func @transform_1(%arg0: i32) -> (i32, i32) {
    %c0_i32 = arith.constant 0 : i32
    %c0_i32_0 = arith.constant 0 : i32
    %c0_i32_1 = arith.constant 0 : i32
    return %c0_i32, %c0_i32_0 : i32, i32
  }
  func.func @transform_2(%arg0: i32) -> (i32, i32) {
    %c0_i32 = arith.constant 0 : i32
    %c0_i32_0 = arith.constant 0 : i32
    %c0_i32_1 = arith.constant 0 : i32
    return %c0_i32, %c0_i32_0 : i32, i32
  }
  func.func @transform_3(%arg0: i32) -> (i32, i32) {
    %c0_i32 = arith.constant 0 : i32
    %c0_i32_0 = arith.constant 0 : i32
    return %arg0, %c0_i32 : i32, i32
  }
  func.func @transform_4(%arg0: i32) -> (i32, i32) {
    %c0_i32 = arith.constant 0 : i32
    %c0_i32_0 = arith.constant 0 : i32
    return %arg0, %c0_i32 : i32, i32
  }
}

</mosaic_0001>

<llo_original>
// kernel: tpu_custom_call.1
$region0: #{tpu_custom_call.1}
  #allocation0 [shape = 'u32[]', space=smem, size = 0x4, offset = 0x4, fixed_abs, tag = 'smem constant byte address 0x4 - core index']
  #allocation1 [shape = 'u32[72,128]{1,0:T(1,128)}', space=vmem, size = 0x9000, scoped, tag = 'internal scratch']
  %s0 = inlined_call_operand.hbm [shape: f32[16,32], index: 0, kind: input, shape index: {}]
  %s1 = inlined_call_operand.hbm [shape: f32[32,64], index: 1, kind: input, shape index: {}]
  %s2 = inlined_call_operand.vmem [shape: f32[1,64], index: 2, kind: input, shape index: {}]
  %s3 = inlined_call_operand.hbm [shape: f32[16,32], index: 3, kind: output, shape index: {0}]
  %s4 = inlined_call_operand.hbm [shape: f32[16,32], index: 4, kind: output, shape index: {1}]
  %5 = xla_tuple %s3, %s4
  %s6 = sld [smem:[#allocation0]]
  $region38: #{tpu_custom_call.1} parent=0
    _
  %s8 = ssub.s32 1, %s6
  %s9 = scalar_select 0, %s8, %s6
  $region1: #{tpu_custom_call.1} parent=0
    #allocation2 [shape = 'u8[8192]{0}', space=vmem, size = 0x2000, scoped, tag = 'input window, operand 0, single buffered']
    #allocation3 [shape = 's32[1]{0}', space=sflag, size = 0x4, scoped, tag = 'scoped memory for tpu_custom_call.1']
    #allocation4 [shape = 's32[1]{0}', space=sflag, size = 0x4, scoped, tag = 'scoped memory for tpu_custom_call.1']
    #allocation5 [shape = 'u8[16384]{0}', space=vmem, size = 0x4000, scoped, tag = 'input window, operand 1, single buffered']
    #allocation6 [shape = 's32[1]{0}', space=sflag, size = 0x4, scoped, tag = 'scoped memory for tpu_custom_call.1']
    #allocation7 [shape = 'u8[8192]{0}', space=vmem, size = 0x2000, scoped, tag = 'output window, operand 0, single buffered']
    #allocation8 [shape = 'u8[8192]{0}', space=vmem, size = 0x2000, scoped, tag = 'output window, operand 1, single buffered']
    #allocation9 [shape = 's32[1]{0}', space=sflag, size = 0x4, scoped, tag = 'scoped memory for tpu_custom_call.1']
    %10 = vsyncpa [#allocation3], 0
    %11 = vsyncpa [#allocation6], 0
    %12 = vsyncpa [#allocation4], 0
    %13 = vsyncpa [#allocation9], 0
    // Predicated region
    $region2: #{tpu_custom_call.1} parent=1 // pred_check
      _
    $region3: #{tpu_custom_call.1} parent=1 // pred_check_branch
      %15 = sbr.rel (0) target = $region5
    $region4: #{tpu_custom_call.1} parent=1 // pred_region
      %17 = vsyncadd [#allocation3], 0
      %s18 = sshll.u32 %s0, 4
      %s19 = int_to_ptr.hbm [resolvable:$true] %s18
      %s20 = sshll.u32 [#allocation2], 4
      %s21 = int_to_ptr.vmem [resolvable:$true] %s20
      %26 = dma.hbm_to_vmem [thread:$0]  %s19, 256, %s21, [#allocation3], 128, 128, 8
    $region5: #{tpu_custom_call.1} parent=1 // pred_fallthru
      _
    // Predicated region
    $region6: #{tpu_custom_call.1} parent=1 // pred_check
      _
    $region7: #{tpu_custom_call.1} parent=1 // pred_check_branch
      %28 = sbr.rel (0) target = $region9
    $region8: #{tpu_custom_call.1} parent=1 // pred_region
      %30 = vsyncadd [#allocation6], 0
      %s31 = sshll.u32 %s1, 4
      %s32 = int_to_ptr.hbm [resolvable:$true] %s31
      %s33 = sshll.u32 [#allocation5], 4
      %s34 = int_to_ptr.vmem [resolvable:$true] %s33
      %39 = dma.hbm_to_vmem [thread:$0]  %s32, 512, %s34, [#allocation6], 128, 128, 8
    $region9: #{tpu_custom_call.1} parent=1 // pred_fallthru
      _
    // Predicated region
    $region10: #{tpu_custom_call.1} parent=1 // pred_check
      _
    $region11: #{tpu_custom_call.1} parent=1 // pred_check_branch
      %41 = sbr.rel (0) target = $region13
    $region12: #{tpu_custom_call.1} parent=1 // pred_region
      _
    $region13: #{tpu_custom_call.1} parent=1 // pred_fallthru
      _
    // Predicated region
    $region14: #{tpu_custom_call.1} parent=1 // pred_check
      _
    $region15: #{tpu_custom_call.1} parent=1 // pred_check_branch
      %43 = sbr.rel (0) target = $region17
    $region16: #{tpu_custom_call.1} parent=1 // pred_region
      %45 = dma.done [#allocation3], 256
    $region17: #{tpu_custom_call.1} parent=1 // pred_fallthru
      _
    // Predicated region
    $region18: #{tpu_custom_call.1} parent=1 // pred_check
      _
    $region19: #{tpu_custom_call.1} parent=1 // pred_check_branch
      %47 = sbr.rel (0) target = $region21
    $region20: #{tpu_custom_call.1} parent=1 // pred_region
      %49 = dma.done [#allocation6], 512
    $region21: #{tpu_custom_call.1} parent=1 // pred_fallthru
      _
    %v50 = vld [vmem:[#allocation2] sm:$0xff]
    %v51 = vld [vmem:[#allocation2 + $0x8] sm:$0xff]
    %v52 = vld [vmem:[#allocation5] sm:$0xff]
    %v53 = vld [vmem:[#allocation5 + $0x8] sm:$0xff]
    %v54 = vld [vmem:[#allocation5 + $0x10] sm:$0xff]
    %v55 = vld [vmem:[#allocation5 + $0x18] sm:$0xff]
    %v56 = vld [vmem:[%s2] sm:$0x1]
    %v58 = vperm.slane %v56, 0
    %vm60 = vcmask 261120
    %v62 = vsel %vm60, %v50, 0
    %v65 = vsel %vm60, %v51, 0
    %67 = vmatpush.msra.mxu0 0.0
    %68 = vmatpush.msra.mxu0 0.0
    %69 = vmatpush.msra.mxu0 0.0
    %70 = vmatpush.msra.mxu0 0.0
    %71 = vmatpush.msra.mxu0 0.0
    %72 = vmatpush.msra.mxu0 0.0
    %73 = vmatpush.msra.mxu0 0.0
    %74 = vmatpush.msra.mxu0 0.0
    %75 = vmatpush.msra.mxu0 0.0
    %76 = vmatpush.msra.mxu0 0.0
    %77 = vmatpush.msra.mxu0 0.0
    %78 = vmatpush.msra.mxu0 0.0
    %79 = vmatpush.msra.mxu0 %v55
    %80 = vmatpush.msra.mxu0 %v54
    %81 = vmatpush.msra.mxu0 %v53
    %82 = vmatpush.msra.mxu0 %v52
    %83 = vmatmul.f32.gmra.mxu0 %v62
    %v84 = vpop.f32.mrf.mxu0
    %v85 = vadd.f32 %v58, %v84
    %86 = vmatmul.f32.gmra.mxu0 %v65
    %v87 = vpop.f32.mrf.mxu0
    %v88 = vadd.f32 %v58, %v87
    %89 = vdwg.mxu0
    %v90 = vmax.f32 %v85, 0.0
    %v91 = vmax.f32 %v88, 0.0
    %92 = vst.msk [vmem:[#allocation7] sm:$0xff] %vm60, %v90
    %93 = vst.msk [vmem:[#allocation7 + $0x8] sm:$0xff] %vm60, %v91
    %96 = vrot.lane.b32.xlu0 %v90, 96
    %v97 = vpop.permute.xlu0 %96
    %98 = vrot.lane.b32.xlu0 %v91, 96
    %v99 = vpop.permute.xlu0 %98
    %102 = vst.msk [vmem:[#allocation8] sm:$0xff] %vm60, %v97
    %103 = vst.msk [vmem:[#allocation8 + $0x8] sm:$0xff] %vm60, %v99
    // Predicated region
    $region22: #{tpu_custom_call.1} parent=1 // pred_check
      _
    $region23: #{tpu_custom_call.1} parent=1 // pred_check_branch
      %105 = sbr.rel (0) target = $region25
    $region24: #{tpu_custom_call.1} parent=1 // pred_region
      %107 = vsyncadd [#allocation4], 0
      %s108 = sshll.u32 [#allocation7], 4
      %s109 = int_to_ptr.vmem [resolvable:$true] %s108
      %s110 = sshll.u32 %s3, 4
      %s111 = int_to_ptr.hbm [resolvable:$true] %s110
      %116 = dma.vmem_to_hbm [thread:$0]  %s109, 256, %s111, [#allocation4], 128, 128, 8
    $region25: #{tpu_custom_call.1} parent=1 // pred_fallthru
      _
    // Predicated region
    $region26: #{tpu_custom_call.1} parent=1 // pred_check
      _
    $region27: #{tpu_custom_call.1} parent=1 // pred_check_branch
      %118 = sbr.rel (0) target = $region29
    $region28: #{tpu_custom_call.1} parent=1 // pred_region
      %120 = vsyncadd [#allocation9], 0
      %s121 = sshll.u32 [#allocation8], 4
      %s122 = int_to_ptr.vmem [resolvable:$true] %s121
      %s123 = sshll.u32 %s4, 4
      %s124 = int_to_ptr.hbm [resolvable:$true] %s123
      %129 = dma.vmem_to_hbm [thread:$0]  %s122, 256, %s124, [#allocation9], 128, 128, 8
    $region29: #{tpu_custom_call.1} parent=1 // pred_fallthru
      _
    // Predicated region
    $region30: #{tpu_custom_call.1} parent=1 // pred_check
      _
    $region31: #{tpu_custom_call.1} parent=1 // pred_check_branch
      %131 = sbr.rel (0) target = $region33
    $region32: #{tpu_custom_call.1} parent=1 // pred_region
      %133 = dma.done [#allocation4], 256
    $region33: #{tpu_custom_call.1} parent=1 // pred_fallthru
      _
    // Predicated region
    $region34: #{tpu_custom_call.1} parent=1 // pred_check
      _
    $region35: #{tpu_custom_call.1} parent=1 // pred_check_branch
      %135 = sbr.rel (0) target = $region37
    $region36: #{tpu_custom_call.1} parent=1 // pred_region
      %137 = dma.done [#allocation9], 256
    $region37: #{tpu_custom_call.1} parent=1 // pred_fallthru
      _
    %138 = vsyncpa [#allocation3], 1
    %139 = vsyncpa [#allocation6], 1
    %140 = vsyncpa [#allocation4], 1
    %141 = vsyncpa [#allocation9], 1

</llo_original>
